<compile_context>
chip_gen: v7x
topology: tpu7x:2x2x1
jax: 0.10.0
libtpu: 0.0.40
codegen_flags: <defaults>
</compile_context>

<pallas_src>
import jax
import jax.numpy as jnp
from jax.experimental import pallas as pl
from jax.experimental.pallas import tpu as pltpu

WINDOW_SIZE = 10
HID1 = 5
HID2 = 2
PAD_F = 128       # lane width for hidden activations / weights inside the kernel
TB_MAX = 4096     # batch-tile rows (amortizes per-step overhead; ~10 MiB VMEM at 4096)
MIN_SPLIT = 256   # only force a >=2-step grid (v7x megacore) when each core gets >= this


def _round_up(n, m):
    return ((n + m - 1) // m) * m


def _pad2d(a, rows, cols, dtype):
    out = jnp.zeros((rows, cols), dtype=dtype)
    return out.at[: a.shape[0], : a.shape[1]].set(a.astype(dtype))


def _autoencoder_kernel(x_ref,
                        w1_ref, b1_ref,
                        w2_ref, b2_ref,
                        w3_ref, b3_ref,
                        w4_ref, b4_ref,
                        o_ref):
    """Four fused (bf16-matmul + f32 bias + ReLU) stages on one (TB, 10) batch tile."""
    x = x_ref[...].astype(jnp.bfloat16)                                # (TB, 10) bf16

    h = jnp.dot(x, w1_ref[...], preferred_element_type=jnp.float32) + b1_ref[...]
    h = jnp.maximum(h, 0.0)                                            # (TB, 128) f32, cols >= 5 are 0

    h = jnp.dot(h.astype(jnp.bfloat16), w2_ref[...],
                preferred_element_type=jnp.float32) + b2_ref[...]
    h = jnp.maximum(h, 0.0)                                            # (TB, 128) f32, cols >= 2 are 0

    h = jnp.dot(h.astype(jnp.bfloat16), w3_ref[...],
                preferred_element_type=jnp.float32) + b3_ref[...]
    h = jnp.maximum(h, 0.0)                                            # (TB, 128) f32, cols >= 5 are 0

    h = jnp.dot(h.astype(jnp.bfloat16), w4_ref[...],
                preferred_element_type=jnp.float32) + b4_ref[...]
    h = jnp.maximum(h, 0.0)                                            # (TB, 10) f32

    o_ref[...] = h.astype(o_ref.dtype)


def init_params(key):
    """Deterministic init mimicking torch.nn.Linear default U(-1/sqrt(fan_in), +).

    Weights are stored as (in_features, out_features) so y = x @ W + b."""
    dims = [(WINDOW_SIZE, HID1), (HID1, HID2), (HID2, HID1), (HID1, WINDOW_SIZE)]
    params = []
    for (fan_in, fan_out) in dims:
        key, kw, kb = jax.random.split(key, 3)
        bound = 1.0 / jnp.sqrt(float(fan_in))
        w = jax.random.uniform(kw, (fan_in, fan_out), jnp.float32, -bound, bound)
        b = jax.random.uniform(kb, (fan_out,), jnp.float32, -bound, bound)
        params.append((w, b))
    return params


def pack_params(params):
    """One-time padding of weights/biases to kernel layout (hoisted out of forward).

    Weights are padded and stored as bf16 (MXU operands); biases stay f32."""
    (w1, b1), (w2, b2), (w3, b3), (w4, b4) = params
    w1_p = _pad2d(w1, WINDOW_SIZE, PAD_F, jnp.bfloat16)   # (10, 128)
    w2_p = _pad2d(w2, PAD_F, PAD_F, jnp.bfloat16)         # (128, 128)
    w3_p = _pad2d(w3, PAD_F, PAD_F, jnp.bfloat16)         # (128, 128)
    w4_p = _pad2d(w4, PAD_F, WINDOW_SIZE, jnp.bfloat16)   # (128, 10) -> output stays 10 lanes
    b1_p = _pad2d(b1[None, :], 1, PAD_F, jnp.float32)     # (1, 128)
    b2_p = _pad2d(b2[None, :], 1, PAD_F, jnp.float32)     # (1, 128)
    b3_p = _pad2d(b3[None, :], 1, PAD_F, jnp.float32)     # (1, 128)
    b4_p = b4[None, :].astype(jnp.float32)                # (1, 10)
    return (w1_p, b1_p, w2_p, b2_p, w3_p, b3_p, w4_p, b4_p)


@jax.jit
def autoencoder_forward(x, packed_params):
    """x: (B, WINDOW_SIZE) float32 -> (B, WINDOW_SIZE) float32."""
    w1_p, b1_p, w2_p, b2_p, w3_p, b3_p, w4_p, b4_p = packed_params
    B = x.shape[0]

    # Padding-safe tile/grid split (at most <8*n padded rows).
    n = pl.cdiv(B, TB_MAX)
    if n < 2 and B >= 2 * MIN_SPLIT:
        n = 2                                # give both v7x TensorCores work
    TB = _round_up(pl.cdiv(B, n), 8)
    B_pad = n * TB

    x = x.astype(jnp.float32)
    if B_pad != B:
        x_p = jnp.zeros((B_pad, WINDOW_SIZE), jnp.float32).at[:B, :].set(x)
    else:
        x_p = x

    row_spec = pl.BlockSpec((TB, WINDOW_SIZE), lambda i: (i, 0))
    const = lambda i: (0, 0)   # weights/biases: same block every step -> stay VMEM-resident

    # Advisory cost estimate so XLA can overlap around the custom call.
    flops = 2 * B_pad * (WINDOW_SIZE * PAD_F + 2 * PAD_F * PAD_F + PAD_F * WINDOW_SIZE)
    w_bytes = sum(int(a.size) * a.dtype.itemsize
                  for a in (w1_p, b1_p, w2_p, b2_p, w3_p, b3_p, w4_p, b4_p))
    bytes_accessed = 2 * B_pad * WINDOW_SIZE * 4 + w_bytes

    out = pl.pallas_call(
        _autoencoder_kernel,
        out_shape=jax.ShapeDtypeStruct((B_pad, WINDOW_SIZE), jnp.float32),
        grid=(n,),
        in_specs=[
            row_spec,
            pl.BlockSpec(w1_p.shape, const), pl.BlockSpec(b1_p.shape, const),
            pl.BlockSpec(w2_p.shape, const), pl.BlockSpec(b2_p.shape, const),
            pl.BlockSpec(w3_p.shape, const), pl.BlockSpec(b3_p.shape, const),
            pl.BlockSpec(w4_p.shape, const), pl.BlockSpec(b4_p.shape, const),
        ],
        out_specs=pl.BlockSpec((TB, WINDOW_SIZE), lambda i: (i, 0)),
        compiler_params=pltpu.CompilerParams(
            dimension_semantics=("parallel",),      # megacore sharding on v7x
            vmem_limit_bytes=32 * 1024 * 1024),     # explicit headroom for large TB
        cost_estimate=pl.CostEstimate(
            flops=int(flops), transcendentals=0, bytes_accessed=int(bytes_accessed)),
    )(x_p, w1_p, b1_p, w2_p, b2_p, w3_p, b3_p, w4_p, b4_p)

    return out[:B] if B_pad != B else out


def _reference_forward(x, params):
    h = x
    for (w, b) in params:
        h = jnp.maximum(h @ w + b, 0.0)
    return h


if __name__ == "__main__":
    key = jax.random.PRNGKey(0)
    k_x, k_x2, k_x3, k_p = jax.random.split(key, 4)

    params = init_params(k_p)
    packed = pack_params(params)

    # bf16 MXU operands -> relaxed tolerance vs. the pure-f32 reference.
    ATOL, RTOL = 2e-2, 2e-2

    # Primary small example (batch multiple of 8, single grid step).
    batch = 8
    x = jax.random.normal(k_x, (batch, WINDOW_SIZE), dtype=jnp.float32)
    out = jax.block_until_ready(autoencoder_forward(x, packed))
    ref = _reference_forward(x, params)
    assert out.shape == (batch, WINDOW_SIZE)
    assert jnp.allclose(out, ref, atol=ATOL, rtol=RTOL), "mismatch vs pure-JAX reference"

    # Ragged batch (exercises the row-padding path).
    batch2 = 19
    x2 = jax.random.normal(k_x2, (batch2, WINDOW_SIZE), dtype=jnp.float32)
    out2 = jax.block_until_ready(autoencoder_forward(x2, packed))
    ref2 = _reference_forward(x2, params)
    assert out2.shape == (batch2, WINDOW_SIZE)
    assert jnp.allclose(out2, ref2, atol=ATOL, rtol=RTOL), "mismatch vs pure-JAX reference"

    # Larger ragged batch (exercises the forced >=2-step grid / megacore path).
    batch3 = 600
    x3 = jax.random.normal(k_x3, (batch3, WINDOW_SIZE), dtype=jnp.float32)
    out3 = jax.block_until_ready(autoencoder_forward(x3, packed))
    ref3 = _reference_forward(x3, params)
    assert out3.shape == (batch3, WINDOW_SIZE)
    assert jnp.allclose(out3, ref3, atol=ATOL, rtol=RTOL), "mismatch vs pure-JAX reference"

    print("KERNEL_OK")
</pallas_src>

<mosaic_0001>
module attributes {stable_mosaic.version = 11 : i64} {
  func.func @_autoencoder_kernel(%arg0: i32, %arg1: memref<8x10xf32, #tpu.memory_space<vmem>>, %arg2: memref<10x128xbf16, #tpu.memory_space<vmem>>, %arg3: memref<1x128xf32, #tpu.memory_space<vmem>>, %arg4: memref<128x128xbf16, #tpu.memory_space<vmem>>, %arg5: memref<1x128xf32, #tpu.memory_space<vmem>>, %arg6: memref<128x128xbf16, #tpu.memory_space<vmem>>, %arg7: memref<1x128xf32, #tpu.memory_space<vmem>>, %arg8: memref<128x10xbf16, #tpu.memory_space<vmem>>, %arg9: memref<1x10xf32, #tpu.memory_space<vmem>>, %arg10: memref<8x10xf32, #tpu.memory_space<vmem>>) attributes {dimension_semantics = [#tpu.dimension_semantics<parallel>], iteration_bounds = array<i64: 1>, scalar_prefetch = 0 : i64, scratch_operands = 0 : i64, tpu.core_type = #tpu.core_type<tc>, window_params = [{transform_indices = @transform_0, window_bounds = array<i64: 8, 10>}, {pipeline_mode = #tpu.pipeline_mode<synchronous>, transform_indices = @transform_1, window_bounds = array<i64: 10, 128>}, {pipeline_mode = #tpu.pipeline_mode<synchronous>, transform_indices = @transform_2, window_bounds = array<i64: 1, 128>}, {pipeline_mode = #tpu.pipeline_mode<synchronous>, transform_indices = @transform_3, window_bounds = array<i64: 128, 128>}, {pipeline_mode = #tpu.pipeline_mode<synchronous>, transform_indices = @transform_4, window_bounds = array<i64: 1, 128>}, {pipeline_mode = #tpu.pipeline_mode<synchronous>, transform_indices = @transform_5, window_bounds = array<i64: 128, 128>}, {pipeline_mode = #tpu.pipeline_mode<synchronous>, transform_indices = @transform_6, window_bounds = array<i64: 1, 128>}, {pipeline_mode = #tpu.pipeline_mode<synchronous>, transform_indices = @transform_7, window_bounds = array<i64: 128, 10>}, {pipeline_mode = #tpu.pipeline_mode<synchronous>, transform_indices = @transform_8, window_bounds = array<i64: 1, 10>}, {transform_indices = @transform_9, window_bounds = array<i64: 8, 10>}]} {
    %c0 = arith.constant 0 : index
    %c0_0 = arith.constant 0 : index
    %0 = vector.load %arg1[%c0, %c0_0] : memref<8x10xf32, #tpu.memory_space<vmem>>, vector<8x10xf32>
    %1 = arith.truncf %0 : vector<8x10xf32> to vector<8x10xbf16>
    %c0_1 = arith.constant 0 : index
    %c0_2 = arith.constant 0 : index
    %2 = vector.load %arg2[%c0_1, %c0_2] : memref<10x128xbf16, #tpu.memory_space<vmem>>, vector<10x128xbf16>
    %cst = arith.constant dense<0.000000e+00> : vector<8x128xf32>
    %3 = tpu.matmul %1, %2, %cst {dimension_numbers = #tpu.dot_dimension_numbers<[1], [0], [0], [1], [0, 0, 1, 1], [], []>} : vector<8x10xbf16>, vector<10x128xbf16>, vector<8x128xf32> -> vector<8x128xf32>
    %c0_3 = arith.constant 0 : index
    %c0_4 = arith.constant 0 : index
    %4 = vector.load %arg3[%c0_3, %c0_4] : memref<1x128xf32, #tpu.memory_space<vmem>>, vector<1x128xf32>
    %5 = vector.broadcast %4 : vector<1x128xf32> to vector<8x128xf32>
    %6 = arith.addf %3, %5 : vector<8x128xf32>
    %cst_5 = arith.constant 0.000000e+00 : f32
    %7 = vector.broadcast %cst_5 : f32 to vector<8x128xf32>
    %8 = arith.maximumf %6, %7 : vector<8x128xf32>
    %9 = arith.truncf %8 : vector<8x128xf32> to vector<8x128xbf16>
    %c0_6 = arith.constant 0 : index
    %c0_7 = arith.constant 0 : index
    %10 = vector.load %arg4[%c0_6, %c0_7] : memref<128x128xbf16, #tpu.memory_space<vmem>>, vector<128x128xbf16>
    %cst_8 = arith.constant dense<0.000000e+00> : vector<8x128xf32>
    %11 = tpu.matmul %9, %10, %cst_8 {dimension_numbers = #tpu.dot_dimension_numbers<[1], [0], [0], [1], [0, 0, 1, 1], [], []>} : vector<8x128xbf16>, vector<128x128xbf16>, vector<8x128xf32> -> vector<8x128xf32>
    %c0_9 = arith.constant 0 : index
    %c0_10 = arith.constant 0 : index
    %12 = vector.load %arg5[%c0_9, %c0_10] : memref<1x128xf32, #tpu.memory_space<vmem>>, vector<1x128xf32>
    %13 = vector.broadcast %12 : vector<1x128xf32> to vector<8x128xf32>
    %14 = arith.addf %11, %13 : vector<8x128xf32>
    %cst_11 = arith.constant 0.000000e+00 : f32
    %15 = vector.broadcast %cst_11 : f32 to vector<8x128xf32>
    %16 = arith.maximumf %14, %15 : vector<8x128xf32>
    %17 = arith.truncf %16 : vector<8x128xf32> to vector<8x128xbf16>
    %c0_12 = arith.constant 0 : index
    %c0_13 = arith.constant 0 : index
    %18 = vector.load %arg6[%c0_12, %c0_13] : memref<128x128xbf16, #tpu.memory_space<vmem>>, vector<128x128xbf16>
    %cst_14 = arith.constant dense<0.000000e+00> : vector<8x128xf32>
    %19 = tpu.matmul %17, %18, %cst_14 {dimension_numbers = #tpu.dot_dimension_numbers<[1], [0], [0], [1], [0, 0, 1, 1], [], []>} : vector<8x128xbf16>, vector<128x128xbf16>, vector<8x128xf32> -> vector<8x128xf32>
    %c0_15 = arith.constant 0 : index
    %c0_16 = arith.constant 0 : index
    %20 = vector.load %arg7[%c0_15, %c0_16] : memref<1x128xf32, #tpu.memory_space<vmem>>, vector<1x128xf32>
    %21 = vector.broadcast %20 : vector<1x128xf32> to vector<8x128xf32>
    %22 = arith.addf %19, %21 : vector<8x128xf32>
    %cst_17 = arith.constant 0.000000e+00 : f32
    %23 = vector.broadcast %cst_17 : f32 to vector<8x128xf32>
    %24 = arith.maximumf %22, %23 : vector<8x128xf32>
    %25 = arith.truncf %24 : vector<8x128xf32> to vector<8x128xbf16>
    %c0_18 = arith.constant 0 : index
    %c0_19 = arith.constant 0 : index
    %26 = vector.load %arg8[%c0_18, %c0_19] : memref<128x10xbf16, #tpu.memory_space<vmem>>, vector<128x10xbf16>
    %cst_20 = arith.constant dense<0.000000e+00> : vector<8x10xf32>
    %27 = tpu.matmul %25, %26, %cst_20 {dimension_numbers = #tpu.dot_dimension_numbers<[1], [0], [0], [1], [0, 0, 1, 1], [], []>} : vector<8x128xbf16>, vector<128x10xbf16>, vector<8x10xf32> -> vector<8x10xf32>
    %c0_21 = arith.constant 0 : index
    %c0_22 = arith.constant 0 : index
    %28 = vector.load %arg9[%c0_21, %c0_22] : memref<1x10xf32, #tpu.memory_space<vmem>>, vector<1x10xf32>
    %29 = vector.broadcast %28 : vector<1x10xf32> to vector<8x10xf32>
    %30 = arith.addf %27, %29 : vector<8x10xf32>
    %cst_23 = arith.constant 0.000000e+00 : f32
    %31 = vector.broadcast %cst_23 : f32 to vector<8x10xf32>
    %32 = arith.maximumf %30, %31 : vector<8x10xf32>
    %c0_24 = arith.constant 0 : index
    %c0_25 = arith.constant 0 : index
    %33 = vector.load %arg10[%c0_24, %c0_25] : memref<8x10xf32, #tpu.memory_space<vmem>>, vector<8x10xf32>
    tpu.vector_store %arg10[%c0_24, %c0_25], %32 {strides = array<i32>} : memref<8x10xf32, #tpu.memory_space<vmem>>, vector<8x10xf32>,
    return
  }
  func.func @transform_0(%arg0: i32) -> (i32, i32) {
    %c0_i32 = arith.constant 0 : i32
    %c0_i32_0 = arith.constant 0 : i32
    return %arg0, %c0_i32 : i32, i32
  }
  func.func @transform_1(%arg0: i32) -> (i32, i32) {
    %c0_i32 = arith.constant 0 : i32
    %c0_i32_0 = arith.constant 0 : i32
    %c0_i32_1 = arith.constant 0 : i32
    return %c0_i32, %c0_i32_0 : i32, i32
  }
  func.func @transform_2(%arg0: i32) -> (i32, i32) {
    %c0_i32 = arith.constant 0 : i32
    %c0_i32_0 = arith.constant 0 : i32
    %c0_i32_1 = arith.constant 0 : i32
    return %c0_i32, %c0_i32_0 : i32, i32
  }
  func.func @transform_3(%arg0: i32) -> (i32, i32) {
    %c0_i32 = arith.constant 0 : i32
    %c0_i32_0 = arith.constant 0 : i32
    %c0_i32_1 = arith.constant 0 : i32
    return %c0_i32, %c0_i32_0 : i32, i32
  }
  func.func @transform_4(%arg0: i32) -> (i32, i32) {
    %c0_i32 = arith.constant 0 : i32
    %c0_i32_0 = arith.constant 0 : i32
    %c0_i32_1 = arith.constant 0 : i32
    return %c0_i32, %c0_i32_0 : i32, i32
  }
  func.func @transform_5(%arg0: i32) -> (i32, i32) {
    %c0_i32 = arith.constant 0 : i32
    %c0_i32_0 = arith.constant 0 : i32
    %c0_i32_1 = arith.constant 0 : i32
    return %c0_i32, %c0_i32_0 : i32, i32
  }
  func.func @transform_6(%arg0: i32) -> (i32, i32) {
    %c0_i32 = arith.constant 0 : i32
    %c0_i32_0 = arith.constant 0 : i32
    %c0_i32_1 = arith.constant 0 : i32
    return %c0_i32, %c0_i32_0 : i32, i32
  }
  func.func @transform_7(%arg0: i32) -> (i32, i32) {
    %c0_i32 = arith.constant 0 : i32
    %c0_i32_0 = arith.constant 0 : i32
    %c0_i32_1 = arith.constant 0 : i32
    return %c0_i32, %c0_i32_0 : i32, i32
  }
  func.func @transform_8(%arg0: i32) -> (i32, i32) {
    %c0_i32 = arith.constant 0 : i32
    %c0_i32_0 = arith.constant 0 : i32
    %c0_i32_1 = arith.constant 0 : i32
    return %c0_i32, %c0_i32_0 : i32, i32
  }
  func.func @transform_9(%arg0: i32) -> (i32, i32) {
    %c0_i32 = arith.constant 0 : i32
    %c0_i32_0 = arith.constant 0 : i32
    return %arg0, %c0_i32 : i32, i32
  }
}

</mosaic_0001>

<llo_original>
// kernel: autoencoder_forward.1
$region0: #{autoencoder_forward.1}
  #allocation0 [shape = 'u32[]', space=smem, size = 0x4, offset = 0x4, fixed_abs, tag = 'smem constant byte address 0x4 - core index']
  #allocation1 [shape = 'u32[144,128]{1,0:T(1,128)}', space=vmem, size = 0x12000, scoped, tag = 'internal scratch']
  %s0 = inlined_call_operand.vmem [shape: f32[8,10], index: 0, kind: input, shape index: {}]
  %s1 = inlined_call_operand.vmem [shape: bf16[10,128], index: 1, kind: input, shape index: {}]
  %s2 = inlined_call_operand.vmem [shape: f32[1,128], index: 2, kind: input, shape index: {}]
  %s3 = inlined_call_operand.vmem [shape: bf16[128,128], index: 3, kind: input, shape index: {}]
  %s4 = inlined_call_operand.vmem [shape: f32[1,128], index: 4, kind: input, shape index: {}]
  %s5 = inlined_call_operand.hbm [shape: bf16[128,128], index: 5, kind: input, shape index: {}]
  %s6 = inlined_call_operand.vmem [shape: f32[1,128], index: 6, kind: input, shape index: {}]
  %s7 = inlined_call_operand.vmem [shape: bf16[128,10], index: 7, kind: input, shape index: {}]
  %s8 = inlined_call_operand.vmem [shape: f32[1,10], index: 8, kind: input, shape index: {}]
  %s9 = inlined_call_operand.hbm [shape: f32[8,10], index: 9, kind: output, shape index: {}]
  %s10 = sld [smem:[#allocation0]]
  $region50: #{autoencoder_forward.1} parent=0
    _
  %s12 = ssub.s32 1, %s10
  %s13 = scalar_select 0, %s12, %s10
  $region1: #{autoencoder_forward.1} parent=0
    #allocation2 [shape = 'u8[32768]{0}', space=vmem, size = 0x8000, scoped, tag = 'input window, operand 5, single buffered']
    #allocation3 [shape = 's32[1]{0}', space=sflag, size = 0x4, scoped, tag = 'scoped memory for autoencoder_forward.1']
    #allocation4 [shape = 's32[1]{0}', space=sflag, size = 0x4, scoped, tag = 'scoped memory for autoencoder_forward.1']
    #allocation5 [shape = 'u8[4096]{0}', space=vmem, size = 0x1000, scoped, tag = 'output window, operand 0, single buffered']
    %14 = vsyncpa [#allocation3], 0
    %15 = vsyncpa [#allocation4], 0
    // Predicated region
    $region2: #{autoencoder_forward.1} parent=1 // pred_check
      _
    $region3: #{autoencoder_forward.1} parent=1 // pred_check_branch
      %17 = sbr.rel (0) target = $region5
    $region4: #{autoencoder_forward.1} parent=1 // pred_region
      _
    $region5: #{autoencoder_forward.1} parent=1 // pred_fallthru
      _
    // Predicated region
    $region6: #{autoencoder_forward.1} parent=1 // pred_check
      _
    $region7: #{autoencoder_forward.1} parent=1 // pred_check_branch
      %19 = sbr.rel (0) target = $region9
    $region8: #{autoencoder_forward.1} parent=1 // pred_region
      _
    $region9: #{autoencoder_forward.1} parent=1 // pred_fallthru
      _
    // Predicated region
    $region10: #{autoencoder_forward.1} parent=1 // pred_check
      _
    $region11: #{autoencoder_forward.1} parent=1 // pred_check_branch
      %21 = sbr.rel (0) target = $region13
    $region12: #{autoencoder_forward.1} parent=1 // pred_region
      _
    $region13: #{autoencoder_forward.1} parent=1 // pred_fallthru
      _
    // Predicated region
    $region14: #{autoencoder_forward.1} parent=1 // pred_check
      _
    $region15: #{autoencoder_forward.1} parent=1 // pred_check_branch
      %23 = sbr.rel (0) target = $region17
    $region16: #{autoencoder_forward.1} parent=1 // pred_region
      _
    $region17: #{autoencoder_forward.1} parent=1 // pred_fallthru
      _
    // Predicated region
    $region18: #{autoencoder_forward.1} parent=1 // pred_check
      _
    $region19: #{autoencoder_forward.1} parent=1 // pred_check_branch
      %25 = sbr.rel (0) target = $region21
    $region20: #{autoencoder_forward.1} parent=1 // pred_region
      _
    $region21: #{autoencoder_forward.1} parent=1 // pred_fallthru
      _
    // Predicated region
    $region22: #{autoencoder_forward.1} parent=1 // pred_check
      _
    $region23: #{autoencoder_forward.1} parent=1 // pred_check_branch
      %27 = sbr.rel (0) target = $region25
    $region24: #{autoencoder_forward.1} parent=1 // pred_region
      %s29 = ssub.s32 1024, 1024
      %30 = vsyncadd [#allocation3], %s29
      %s31 = sshll.u32 [#allocation2], 4
      %s32 = int_to_ptr.vmem [resolvable:$true] %s31
      %37 = dma.hbm_to_vmem [thread:$0]  %s5, 1024, %s32, [#allocation3], 64, 64, 4
    $region25: #{autoencoder_forward.1} parent=1 // pred_fallthru
      _
    // Predicated region
    $region26: #{autoencoder_forward.1} parent=1 // pred_check
      _
    $region27: #{autoencoder_forward.1} parent=1 // pred_check_branch
      %39 = sbr.rel (0) target = $region29
    $region28: #{autoencoder_forward.1} parent=1 // pred_region
      _
    $region29: #{autoencoder_forward.1} parent=1 // pred_fallthru
      _
    // Predicated region
    $region30: #{autoencoder_forward.1} parent=1 // pred_check
      _
    $region31: #{autoencoder_forward.1} parent=1 // pred_check_branch
      %41 = sbr.rel (0) target = $region33
    $region32: #{autoencoder_forward.1} parent=1 // pred_region
      _
    $region33: #{autoencoder_forward.1} parent=1 // pred_fallthru
      _
    // Predicated region
    $region34: #{autoencoder_forward.1} parent=1 // pred_check
      _
    $region35: #{autoencoder_forward.1} parent=1 // pred_check_branch
      %43 = sbr.rel (0) target = $region37
    $region36: #{autoencoder_forward.1} parent=1 // pred_region
      _
    $region37: #{autoencoder_forward.1} parent=1 // pred_fallthru
      _
    // Predicated region
    $region38: #{autoencoder_forward.1} parent=1 // pred_check
      _
    $region39: #{autoencoder_forward.1} parent=1 // pred_check_branch
      %45 = sbr.rel (0) target = $region41
    $region40: #{autoencoder_forward.1} parent=1 // pred_region
      %46 = dma.done [#allocation3], 1024
    $region41: #{autoencoder_forward.1} parent=1 // pred_fallthru
      _
    %v48 = vld [vmem:[%s0] sm:$0xff]
    %v49 = vpack.c.bf16 %v48, %v48
    %v50 = vld [vmem:[%s1] sm:$0xf]
    %v51 = vld [vmem:[%s1 + $0x4] sm:$0x1]
    %v52 = vld [vmem:[%s2] sm:$0x1]
    %v54 = vlaneseq
    %v55 = vshrl.u32 %v54, 7
    %v56 = vsub.s32 0, %v55
    %v57 = vrot.slane %v52, %v56
    %v61 = vunpack.c.l.b16 %v50
    %v62 = vunpack.c.l.b16 %v51
    %v63 = vpack.c.b16 %v62, %v61
    %vm64 = vcmask 80896
    %v66 = vsel %vm64, %v49, 0
    %vm68 = vcmask 1044480
    %v70 = vsel %vm68, %v63, 0
    %72 = vmatprep.subr.bf16.mxu0 0
    %73 = vmatpush1.bf16.msra.mxu0 %v70
    %74 = vmatprep.subr.bf16.mxu0 0
    %75 = vmatpush1.bf16.msra.mxu0 0
    %76 = vmatprep.subr.bf16.mxu0 0
    %77 = vmatpush1.bf16.msra.mxu0 0
    %78 = vmatprep.subr.bf16.mxu0 0
    %79 = vmatpush1.bf16.msra.mxu0 0
    %80 = vmatprep.subr.bf16.mxu0 0
    %81 = vmatpush1.bf16.msra.mxu0 0
    %82 = vmatprep.subr.bf16.mxu0 0
    %83 = vmatpush1.bf16.msra.mxu0 0
    %84 = vmatprep.subr.bf16.mxu0 0
    %85 = vmatpush1.bf16.msra.mxu0 0
    %86 = vmatprep.subr.bf16.mxu0 0
    %87 = vmatpush1.bf16.msra.mxu0 0
    %88 = vmatprep.subr.bf16.mxu0 0
    %89 = vmatpush1.bf16.msra.mxu0 0
    %90 = vmatprep.subr.bf16.mxu0 0
    %91 = vmatpush1.bf16.msra.mxu0 0
    %92 = vmatprep.subr.bf16.mxu0 0
    %93 = vmatpush1.bf16.msra.mxu0 0
    %94 = vmatprep.subr.bf16.mxu0 0
    %95 = vmatpush1.bf16.msra.mxu0 0
    %96 = vmatprep.subr.bf16.mxu0 0
    %97 = vmatpush1.bf16.msra.mxu0 0
    %98 = vmatprep.subr.bf16.mxu0 0
    %99 = vmatpush1.bf16.msra.mxu0 0
    %100 = vmatprep.subr.bf16.mxu0 0
    %101 = vmatpush1.bf16.msra.mxu0 0
    %102 = vmatprep.subr.bf16.mxu0 0
    %103 = vmatpush1.bf16.msra.mxu0 0
    %104 = vmatprep.mubr.bf16.mxu0 0
    %105 = vmatmul.mubr.bf16.gmra.mrb[0].mxu0 %v66
    %v106 = vpop.f32.mrb[0].mxu0
    %v107 = vadd.f32 %v57, %v106
    %v108 = vpop.f32.mrb[0].mxu0
    %v109 = vpop.f32.mrb[0].mxu0
    %v110 = vpop.f32.mrb[0].mxu0
    %111 = vdwg.mxu0
    %v112 = vmax.f32 %v107, 0.0
    %v113 = vpack.c.bf16 %v112, %v112
    %v114 = vld [vmem:[%s3] sm:$0xf]
    %v115 = vld [vmem:[%s3 + $0x4] sm:$0xf]
    %v116 = vld [vmem:[%s3 + $0x8] sm:$0xf]
    %v117 = vld [vmem:[%s3 + $0xc] sm:$0xf]
    %v118 = vld [vmem:[%s3 + $0x10] sm:$0xf]
    %v119 = vld [vmem:[%s3 + $0x14] sm:$0xf]
    %v120 = vld [vmem:[%s3 + $0x18] sm:$0xf]
    %v121 = vld [vmem:[%s3 + $0x1c] sm:$0xf]
    %v122 = vld [vmem:[%s3 + $0x20] sm:$0xf]
    %v123 = vld [vmem:[%s3 + $0x24] sm:$0xf]
    %v124 = vld [vmem:[%s3 + $0x28] sm:$0xf]
    %v125 = vld [vmem:[%s3 + $0x2c] sm:$0xf]
    %v126 = vld [vmem:[%s3 + $0x30] sm:$0xf]
    %v127 = vld [vmem:[%s3 + $0x34] sm:$0xf]
    %v128 = vld [vmem:[%s3 + $0x38] sm:$0xf]
    %v129 = vld [vmem:[%s3 + $0x3c] sm:$0xf]
    %v130 = vld [vmem:[%s4] sm:$0x1]
    %v132 = vlaneseq
    %v133 = vshrl.u32 %v132, 7
    %v134 = vsub.s32 0, %v133
    %v135 = vrot.slane %v130, %v134
    %v153 = vunpack.c.l.b16 %v114
    %v154 = vunpack.c.l.b16 %v115
    %v155 = vunpack.c.l.b16 %v116
    %v156 = vunpack.c.l.b16 %v117
    %v157 = vunpack.c.l.b16 %v118
    %v158 = vunpack.c.l.b16 %v119
    %v159 = vunpack.c.l.b16 %v120
    %v160 = vunpack.c.l.b16 %v121
    %v161 = vunpack.c.l.b16 %v122
    %v162 = vunpack.c.l.b16 %v123
    %v163 = vunpack.c.l.b16 %v124
    %v164 = vunpack.c.l.b16 %v125
    %v165 = vunpack.c.l.b16 %v126
    %v166 = vunpack.c.l.b16 %v127
    %v167 = vunpack.c.l.b16 %v128
    %v168 = vunpack.c.l.b16 %v129
    %v169 = vpack.c.b16 %v154, %v153
    %v170 = vpack.c.b16 %v156, %v155
    %v171 = vpack.c.b16 %v158, %v157
    %v172 = vpack.c.b16 %v160, %v159
    %v173 = vpack.c.b16 %v162, %v161
    %v174 = vpack.c.b16 %v164, %v163
    %v175 = vpack.c.b16 %v166, %v165
    %v176 = vpack.c.b16 %v168, %v167
    %185 = vmatprep.subr.bf16.mxu0 0
    %186 = vmatpush1.bf16.msra.mxu0 %v169
    %187 = vmatprep.subr.bf16.mxu0 0
    %188 = vmatpush1.bf16.msra.mxu0 %v170
    %189 = vmatprep.subr.bf16.mxu0 0
    %190 = vmatpush1.bf16.msra.mxu0 %v171
    %191 = vmatprep.subr.bf16.mxu0 0
    %192 = vmatpush1.bf16.msra.mxu0 %v172
    %193 = vmatprep.subr.bf16.mxu0 0
    %194 = vmatpush1.bf16.msra.mxu0 %v173
    %195 = vmatprep.subr.bf16.mxu0 0
    %196 = vmatpush1.bf16.msra.mxu0 %v174
    %197 = vmatprep.subr.bf16.mxu0 0
    %198 = vmatpush1.bf16.msra.mxu0 %v175
    %199 = vmatprep.subr.bf16.mxu0 0
    %200 = vmatpush1.bf16.msra.mxu0 %v176
    %201 = vmatprep.subr.bf16.mxu0 0
    %202 = vmatpush1.bf16.msra.mxu0 0
    %203 = vmatprep.subr.bf16.mxu0 0
    %204 = vmatpush1.bf16.msra.mxu0 0
    %205 = vmatprep.subr.bf16.mxu0 0
    %206 = vmatpush1.bf16.msra.mxu0 0
    %207 = vmatprep.subr.bf16.mxu0 0
    %208 = vmatpush1.bf16.msra.mxu0 0
    %209 = vmatprep.subr.bf16.mxu0 0
    %210 = vmatpush1.bf16.msra.mxu0 0
    %211 = vmatprep.subr.bf16.mxu0 0
    %212 = vmatpush1.bf16.msra.mxu0 0
    %213 = vmatprep.subr.bf16.mxu0 0
    %214 = vmatpush1.bf16.msra.mxu0 0
    %215 = vmatprep.subr.bf16.mxu0 0
    %216 = vmatpush1.bf16.msra.mxu0 0
    %217 = vmatprep.mubr.bf16.mxu0 0
    %218 = vmatmul.mubr.bf16.gmra.mrb[0].mxu0 %v113
    %v219 = vpop.f32.mrb[0].mxu0
    %v220 = vadd.f32 %v135, %v219
    %v221 = vpop.f32.mrb[0].mxu0
    %v222 = vpop.f32.mrb[0].mxu0
    %v223 = vpop.f32.mrb[0].mxu0
    %224 = vdwg.mxu0
    %v225 = vmax.f32 %v220, 0.0
    %v226 = vpack.c.bf16 %v225, %v225
    %v227 = vld [vmem:[#allocation2] sm:$0xf]
    %v228 = vld [vmem:[#allocation2 + $0x4] sm:$0xf]
    %v229 = vld [vmem:[#allocation2 + $0x8] sm:$0xf]
    %v230 = vld [vmem:[#allocation2 + $0xc] sm:$0xf]
    %v231 = vld [vmem:[#allocation2 + $0x10] sm:$0xf]
    %v232 = vld [vmem:[#allocation2 + $0x14] sm:$0xf]
    %v233 = vld [vmem:[#allocation2 + $0x18] sm:$0xf]
    %v234 = vld [vmem:[#allocation2 + $0x1c] sm:$0xf]
    %v235 = vld [vmem:[#allocation2 + $0x20] sm:$0xf]
    %v236 = vld [vmem:[#allocation2 + $0x24] sm:$0xf]
    %v237 = vld [vmem:[#allocation2 + $0x28] sm:$0xf]
    %v238 = vld [vmem:[#allocation2 + $0x2c] sm:$0xf]
    %v239 = vld [vmem:[#allocation2 + $0x30] sm:$0xf]
    %v240 = vld [vmem:[#allocation2 + $0x34] sm:$0xf]
    %v241 = vld [vmem:[#allocation2 + $0x38] sm:$0xf]
    %v242 = vld [vmem:[#allocation2 + $0x3c] sm:$0xf]
    %v243 = vld [vmem:[%s6] sm:$0x1]
    %v245 = vlaneseq
    %v246 = vshrl.u32 %v245, 7
    %v247 = vsub.s32 0, %v246
    %v248 = vrot.slane %v243, %v247
    %v266 = vunpack.c.l.b16 %v227
    %v267 = vunpack.c.l.b16 %v228
    %v268 = vunpack.c.l.b16 %v229
    %v269 = vunpack.c.l.b16 %v230
    %v270 = vunpack.c.l.b16 %v231
    %v271 = vunpack.c.l.b16 %v232
    %v272 = vunpack.c.l.b16 %v233
    %v273 = vunpack.c.l.b16 %v234
    %v274 = vunpack.c.l.b16 %v235
    %v275 = vunpack.c.l.b16 %v236
    %v276 = vunpack.c.l.b16 %v237
    %v277 = vunpack.c.l.b16 %v238
    %v278 = vunpack.c.l.b16 %v239
    %v279 = vunpack.c.l.b16 %v240
    %v280 = vunpack.c.l.b16 %v241
    %v281 = vunpack.c.l.b16 %v242
    %v282 = vpack.c.b16 %v267, %v266
    %v283 = vpack.c.b16 %v269, %v268
    %v284 = vpack.c.b16 %v271, %v270
    %v285 = vpack.c.b16 %v273, %v272
    %v286 = vpack.c.b16 %v275, %v274
    %v287 = vpack.c.b16 %v277, %v276
    %v288 = vpack.c.b16 %v279, %v278
    %v289 = vpack.c.b16 %v281, %v280
    %298 = vmatprep.subr.bf16.mxu0 0
    %299 = vmatpush1.bf16.msra.mxu0 %v282
    %300 = vmatprep.subr.bf16.mxu0 0
    %301 = vmatpush1.bf16.msra.mxu0 %v283
    %302 = vmatprep.subr.bf16.mxu0 0
    %303 = vmatpush1.bf16.msra.mxu0 %v284
    %304 = vmatprep.subr.bf16.mxu0 0
    %305 = vmatpush1.bf16.msra.mxu0 %v285
    %306 = vmatprep.subr.bf16.mxu0 0
    %307 = vmatpush1.bf16.msra.mxu0 %v286
    %308 = vmatprep.subr.bf16.mxu0 0
    %309 = vmatpush1.bf16.msra.mxu0 %v287
    %310 = vmatprep.subr.bf16.mxu0 0
    %311 = vmatpush1.bf16.msra.mxu0 %v288
    %312 = vmatprep.subr.bf16.mxu0 0
    %313 = vmatpush1.bf16.msra.mxu0 %v289
    %314 = vmatprep.subr.bf16.mxu0 0
    %315 = vmatpush1.bf16.msra.mxu0 0
    %316 = vmatprep.subr.bf16.mxu0 0
    %317 = vmatpush1.bf16.msra.mxu0 0
    %318 = vmatprep.subr.bf16.mxu0 0
    %319 = vmatpush1.bf16.msra.mxu0 0
    %320 = vmatprep.subr.bf16.mxu0 0
    %321 = vmatpush1.bf16.msra.mxu0 0
    %322 = vmatprep.subr.bf16.mxu0 0
    %323 = vmatpush1.bf16.msra.mxu0 0
    %324 = vmatprep.subr.bf16.mxu0 0
    %325 = vmatpush1.bf16.msra.mxu0 0
    %326 = vmatprep.subr.bf16.mxu0 0
    %327 = vmatpush1.bf16.msra.mxu0 0
    %328 = vmatprep.subr.bf16.mxu0 0
    %329 = vmatpush1.bf16.msra.mxu0 0
    %330 = vmatprep.mubr.bf16.mxu0 0
    %331 = vmatmul.mubr.bf16.gmra.mrb[0].mxu0 %v226
    %v332 = vpop.f32.mrb[0].mxu0
    %v333 = vadd.f32 %v248, %v332
    %v334 = vpop.f32.mrb[0].mxu0
    %v335 = vpop.f32.mrb[0].mxu0
    %v336 = vpop.f32.mrb[0].mxu0
    %337 = vdwg.mxu0
    %v338 = vmax.f32 %v333, 0.0
    %v339 = vpack.c.bf16 %v338, %v338
    %v340 = vld [vmem:[%s7] sm:$0xf]
    %v341 = vld [vmem:[%s7 + $0x4] sm:$0xf]
    %v342 = vld [vmem:[%s7 + $0x8] sm:$0xf]
    %v343 = vld [vmem:[%s7 + $0xc] sm:$0xf]
    %v344 = vld [vmem:[%s7 + $0x10] sm:$0xf]
    %v345 = vld [vmem:[%s7 + $0x14] sm:$0xf]
    %v346 = vld [vmem:[%s7 + $0x18] sm:$0xf]
    %v347 = vld [vmem:[%s7 + $0x1c] sm:$0xf]
    %v348 = vld [vmem:[%s7 + $0x20] sm:$0xf]
    %v349 = vld [vmem:[%s7 + $0x24] sm:$0xf]
    %v350 = vld [vmem:[%s7 + $0x28] sm:$0xf]
    %v351 = vld [vmem:[%s7 + $0x2c] sm:$0xf]
    %v352 = vld [vmem:[%s7 + $0x30] sm:$0xf]
    %v353 = vld [vmem:[%s7 + $0x34] sm:$0xf]
    %v354 = vld [vmem:[%s7 + $0x38] sm:$0xf]
    %v355 = vld [vmem:[%s7 + $0x3c] sm:$0xf]
    %v356 = vld [vmem:[%s8] sm:$0x1]
    %v358 = vlaneseq
    %v359 = vshrl.u32 %v358, 7
    %v360 = vsub.s32 0, %v359
    %v361 = vrot.slane %v356, %v360
    %v379 = vunpack.c.l.b16 %v340
    %v380 = vunpack.c.l.b16 %v341
    %v381 = vunpack.c.l.b16 %v342
    %v382 = vunpack.c.l.b16 %v343
    %v383 = vunpack.c.l.b16 %v344
    %v384 = vunpack.c.l.b16 %v345
    %v385 = vunpack.c.l.b16 %v346
    %v386 = vunpack.c.l.b16 %v347
    %v387 = vunpack.c.l.b16 %v348
    %v388 = vunpack.c.l.b16 %v349
    %v389 = vunpack.c.l.b16 %v350
    %v390 = vunpack.c.l.b16 %v351
    %v391 = vunpack.c.l.b16 %v352
    %v392 = vunpack.c.l.b16 %v353
    %v393 = vunpack.c.l.b16 %v354
    %v394 = vunpack.c.l.b16 %v355
    %v395 = vpack.c.b16 %v380, %v379
    %v396 = vpack.c.b16 %v382, %v381
    %v397 = vpack.c.b16 %v384, %v383
    %v398 = vpack.c.b16 %v386, %v385
    %v399 = vpack.c.b16 %v388, %v387
    %v400 = vpack.c.b16 %v390, %v389
    %v401 = vpack.c.b16 %v392, %v391
    %v402 = vpack.c.b16 %v394, %v393
    %411 = vmatprep.subr.bf16.mxu0 0
    %412 = vmatpush1.bf16.msra.mxu0 %v395
    %413 = vmatprep.subr.bf16.mxu0 0
    %414 = vmatpush1.bf16.msra.mxu0 %v396
    %415 = vmatprep.subr.bf16.mxu0 0
    %416 = vmatpush1.bf16.msra.mxu0 %v397
    %417 = vmatprep.subr.bf16.mxu0 0
    %418 = vmatpush1.bf16.msra.mxu0 %v398
    %419 = vmatprep.subr.bf16.mxu0 0
    %420 = vmatpush1.bf16.msra.mxu0 %v399
    %421 = vmatprep.subr.bf16.mxu0 0
    %422 = vmatpush1.bf16.msra.mxu0 %v400
    %423 = vmatprep.subr.bf16.mxu0 0
    %424 = vmatpush1.bf16.msra.mxu0 %v401
    %425 = vmatprep.subr.bf16.mxu0 0
    %426 = vmatpush1.bf16.msra.mxu0 %v402
    %427 = vmatprep.subr.bf16.mxu0 0
    %428 = vmatpush1.bf16.msra.mxu0 0
    %429 = vmatprep.subr.bf16.mxu0 0
    %430 = vmatpush1.bf16.msra.mxu0 0
    %431 = vmatprep.subr.bf16.mxu0 0
    %432 = vmatpush1.bf16.msra.mxu0 0
    %433 = vmatprep.subr.bf16.mxu0 0
    %434 = vmatpush1.bf16.msra.mxu0 0
    %435 = vmatprep.subr.bf16.mxu0 0
    %436 = vmatpush1.bf16.msra.mxu0 0
    %437 = vmatprep.subr.bf16.mxu0 0
    %438 = vmatpush1.bf16.msra.mxu0 0
    %439 = vmatprep.subr.bf16.mxu0 0
    %440 = vmatpush1.bf16.msra.mxu0 0
    %441 = vmatprep.subr.bf16.mxu0 0
    %442 = vmatpush1.bf16.msra.mxu0 0
    %443 = vmatprep.mubr.bf16.mxu0 0
    %444 = vmatmul.mubr.bf16.gmra.mrb[0].mxu0 %v339
    %v445 = vpop.f32.mrb[0].mxu0
    %v446 = vadd.f32 %v361, %v445
    %v447 = vpop.f32.mrb[0].mxu0
    %v448 = vpop.f32.mrb[0].mxu0
    %v449 = vpop.f32.mrb[0].mxu0
    %450 = vdwg.mxu0
    %v451 = vmax.f32 %v446, 0.0
    %452 = vst.msk [vmem:[#allocation5] sm:$0xff] %vm64, %v451
    // Predicated region
    $region42: #{autoencoder_forward.1} parent=1 // pred_check
      _
    $region43: #{autoencoder_forward.1} parent=1 // pred_check_branch
      %454 = sbr.rel (0) target = $region45
    $region44: #{autoencoder_forward.1} parent=1 // pred_region
      %s456 = ssub.s32 128, 128
      %457 = vsyncadd [#allocation4], %s456
      %s459 = sshll.u32 [#allocation5], 4
      %s460 = int_to_ptr.vmem [resolvable:$true] %s459
      %462 = dma.vmem_to_hbm [thread:$0]  %s460, 128, %s9, [#allocation4]
    $region45: #{autoencoder_forward.1} parent=1 // pred_fallthru
      _
    // Predicated region
    $region46: #{autoencoder_forward.1} parent=1 // pred_check
      _
    $region47: #{autoencoder_forward.1} parent=1 // pred_check_branch
      %464 = sbr.rel (0) target = $region49
    $region48: #{autoencoder_forward.1} parent=1 // pred_region
      %465 = dma.done [#allocation4], 128
    $region49: #{autoencoder_forward.1} parent=1 // pred_fallthru
      _
    %466 = vsyncpa [#allocation3], 1
    %467 = vsyncpa [#allocation4], 1

</llo_original>
